<compile_context>
chip_gen: v6e
topology: v6e:2x2x1
jax: 0.10.0
libtpu: 0.0.40
codegen_flags: <defaults>
</compile_context>

<pallas_src>
import jax
import jax.numpy as jnp
import numpy as np
from jax.experimental import pallas as pl
from jax.experimental.pallas import tpu as pltpu

_MAX_BLOCK_BYTES = 2 * 1024 * 1024  # per-block cap; 4x buffers = 8 MiB, safe on v5e/v6e/v7x


def _identity_kernel(x_ref, o_ref):
    # Elementwise copy of the current VMEM tile (purely DMA/store bound).
    o_ref[...] = x_ref[...]


def identity(x: jax.Array) -> jax.Array:
    """Identity.forward — the recommended production path: no kernel, no copy."""
    return x


def _lane_dense_layout(total: int, itemsize: int):
    """Pick (rows, lanes, block_rows) with lanes a multiple of 128 dividing total."""
    for lanes in (4096, 2048, 1024, 512, 256, 128):
        if total % lanes == 0:
            rows = total // lanes
            max_rows = max(8, (_MAX_BLOCK_BYTES // (lanes * itemsize)) // 8 * 8)
            block_rows = rows if rows <= max_rows else max_rows  # multiple of 8 if partial
            return rows, lanes, block_rows
    return None


def identity_pallas(x: jax.Array, *, donate_input: bool = False) -> jax.Array:
    """Pallas copy kernel equivalent to Identity.forward.

    Use only when a pallas_call must exist; set donate_input=True when the caller
    no longer needs `x`, so the output aliases the input HBM buffer.
    """
    orig_shape = x.shape
    dtype = x.dtype
    total = int(np.prod(orig_shape)) if x.ndim > 0 else 1

    if total == 0:
        return x  # nothing to copy

    layout = _lane_dense_layout(total, jnp.dtype(dtype).itemsize)
    if layout is not None:
        rows, lanes, block_rows = layout
        x2 = x.reshape(rows, lanes)
        grid = (pl.cdiv(rows, block_rows),)
        block = (block_rows, lanes)
    else:
        # Fallback for odd element counts (incl. scalars): a single full-array
        # block (full-extent blocks are exempt from the (8,128) rule). Such
        # shapes are expected to be tiny for this module.
        x2 = x.reshape(1, 1) if x.ndim == 0 else x.reshape(1, total)
        grid = (1,)
        block = x2.shape

    out2 = pl.pallas_call(
        _identity_kernel,
        out_shape=jax.ShapeDtypeStruct(x2.shape, dtype),
        grid_spec=pl.GridSpec(
            grid=grid,
            in_specs=[pl.BlockSpec(block, lambda i: (i, 0))],
            out_specs=pl.BlockSpec(block, lambda i: (i, 0)),
        ),
        compiler_params=pltpu.CompilerParams(
            dimension_semantics=("parallel",),  # 2 TCs on v7x each copy half the tiles
        ),
        input_output_aliases=({0: 0} if donate_input else {}),
    )(x2)

    return out2.reshape(orig_shape)


if __name__ == "__main__":
    key = jax.random.PRNGKey(0)
    k1, k2 = jax.random.split(key)

    # NCHW input, small shapes consistent with the Conv encoder block.
    x = jax.random.normal(k1, (2, 4, 16, 16), dtype=jnp.float32)

    # Fast path: pure pass-through, no kernel launch.
    y_fast = identity(x)
    assert y_fast is x

    # Pallas copy-kernel path (lane-dense, tiled, pipelined).
    y = identity_pallas(x)
    jax.block_until_ready(y)
    assert y.shape == x.shape and y.dtype == x.dtype
    assert bool(jnp.all(y == x))

    # Donating path: output aliases the input HBM buffer (caller gives up x_don).
    x_don = jax.random.normal(k2, (2, 4, 16, 16), dtype=jnp.float32)
    x_don_host = np.asarray(x_don)  # host copy for the correctness check
    y2 = identity_pallas(x_don, donate_input=True)
    jax.block_until_ready(y2)
    assert y2.shape == x_don_host.shape and y2.dtype == jnp.float32
    assert np.array_equal(np.asarray(y2), x_don_host)

    print("KERNEL_OK")
</pallas_src>

<mosaic_0001>
module attributes {stable_mosaic.version = 11 : i64} {
  func.func @_identity_kernel(%arg0: i32, %arg1: memref<1x2048xf32, #tpu.memory_space<vmem>>, %arg2: memref<1x2048xf32, #tpu.memory_space<vmem>>) attributes {dimension_semantics = [#tpu.dimension_semantics<parallel>], iteration_bounds = array<i64: 1>, scalar_prefetch = 0 : i64, scratch_operands = 0 : i64, tpu.core_type = #tpu.core_type<tc>, window_params = [{transform_indices = @transform_0, window_bounds = array<i64: 1, 2048>}, {transform_indices = @transform_1, window_bounds = array<i64: 1, 2048>}]} {
    %c0 = arith.constant 0 : index
    %c0_0 = arith.constant 0 : index
    %0 = vector.load %arg1[%c0, %c0_0] : memref<1x2048xf32, #tpu.memory_space<vmem>>, vector<1x2048xf32>
    %c0_1 = arith.constant 0 : index
    %c0_2 = arith.constant 0 : index
    %1 = vector.load %arg2[%c0_1, %c0_2] : memref<1x2048xf32, #tpu.memory_space<vmem>>, vector<1x2048xf32>
    tpu.vector_store %arg2[%c0_1, %c0_2], %0 {strides = array<i32>} : memref<1x2048xf32, #tpu.memory_space<vmem>>, vector<1x2048xf32>,
    return
  }
  func.func @transform_0(%arg0: i32) -> (i32, i32) {
    %c0_i32 = arith.constant 0 : i32
    %c0_i32_0 = arith.constant 0 : i32
    return %arg0, %c0_i32 : i32, i32
  }
  func.func @transform_1(%arg0: i32) -> (i32, i32) {
    %c0_i32 = arith.constant 0 : i32
    %c0_i32_0 = arith.constant 0 : i32
    return %arg0, %c0_i32 : i32, i32
  }
}

</mosaic_0001>

<llo_original>
// kernel: tpu_custom_call.1
$region0: #{tpu_custom_call.1}
  #allocation0 [shape = 'u32[]', space=smem, size = 0x4, offset = 0x4, fixed_abs, tag = 'smem constant byte address 0x4 - core index']
  #allocation1 [shape = 'u32[144,128]{1,0:T(1,128)}', space=vmem, size = 0x12000, scoped, tag = 'internal scratch']
  %s0 = inlined_call_operand.hbm [shape: f32[1,2048], index: 0, kind: input, shape index: {}]
  %s1 = inlined_call_operand.hbm [shape: f32[1,2048], index: 1, kind: output, shape index: {}]
  %s2 = sld [smem:[#allocation0]]
  $region18: #{tpu_custom_call.1} parent=0
    _
  %s4 = ssub.s32 1, %s2
  %s5 = scalar_select 0, %s4, %s2
  $region1: #{tpu_custom_call.1} parent=0
    #allocation2 [shape = 'u8[8192]{0}', space=vmem, size = 0x2000, scoped, tag = 'input window, operand 0, single buffered']
    #allocation3 [shape = 's32[1]{0}', space=sflag, size = 0x4, scoped, tag = 'scoped memory for tpu_custom_call.1']
    #allocation4 [shape = 's32[1]{0}', space=sflag, size = 0x4, scoped, tag = 'scoped memory for tpu_custom_call.1']
    #allocation5 [shape = 'u8[8192]{0}', space=vmem, size = 0x2000, scoped, tag = 'output window, operand 0, single buffered']
    %6 = vsyncpa [#allocation3], 0
    %7 = vsyncpa [#allocation4], 0
    // Predicated region
    $region2: #{tpu_custom_call.1} parent=1 // pred_check
      _
    $region3: #{tpu_custom_call.1} parent=1 // pred_check_branch
      %9 = sbr.rel (0) target = $region5
    $region4: #{tpu_custom_call.1} parent=1 // pred_region
      %s11 = ssub.s32 256, 256
      %12 = vsyncadd [#allocation3], %s11
      %s14 = sshll.u32 [#allocation2], 4
      %s15 = int_to_ptr.vmem [resolvable:$true] %s14
      %17 = dma.hbm_to_vmem [thread:$0]  %s0, 256, %s15, [#allocation3]
    $region5: #{tpu_custom_call.1} parent=1 // pred_fallthru
      _
    // Predicated region
    $region6: #{tpu_custom_call.1} parent=1 // pred_check
      _
    $region7: #{tpu_custom_call.1} parent=1 // pred_check_branch
      %19 = sbr.rel (0) target = $region9
    $region8: #{tpu_custom_call.1} parent=1 // pred_region
      %20 = dma.done [#allocation3], 256
    $region9: #{tpu_custom_call.1} parent=1 // pred_fallthru
      _
    %v21 = vld [vmem:[#allocation2] sm:$0xff]
    %v22 = vld [vmem:[#allocation2 + $0x8] sm:$0xff]
    %23 = vst [vmem:[#allocation5] sm:$0xff] %v21
    %24 = vst [vmem:[#allocation5 + $0x8] sm:$0xff] %v22
    // Predicated region
    $region10: #{tpu_custom_call.1} parent=1 // pred_check
      _
    $region11: #{tpu_custom_call.1} parent=1 // pred_check_branch
      %26 = sbr.rel (0) target = $region13
    $region12: #{tpu_custom_call.1} parent=1 // pred_region
      %s28 = ssub.s32 256, 256
      %29 = vsyncadd [#allocation4], %s28
      %s31 = sshll.u32 [#allocation5], 4
      %s32 = int_to_ptr.vmem [resolvable:$true] %s31
      %34 = dma.vmem_to_hbm [thread:$0]  %s32, 256, %s1, [#allocation4]
    $region13: #{tpu_custom_call.1} parent=1 // pred_fallthru
      _
    // Predicated region
    $region14: #{tpu_custom_call.1} parent=1 // pred_check
      _
    $region15: #{tpu_custom_call.1} parent=1 // pred_check_branch
      %36 = sbr.rel (0) target = $region17
    $region16: #{tpu_custom_call.1} parent=1 // pred_region
      %37 = dma.done [#allocation4], 256
    $region17: #{tpu_custom_call.1} parent=1 // pred_fallthru
      _
    %38 = vsyncpa [#allocation3], 1
    %39 = vsyncpa [#allocation4], 1

</llo_original>
